<compile_context>
chip_gen: v6e
topology: v6e:2x2x1
jax: 0.10.0
libtpu: 0.0.40
codegen_flags: <defaults>
</compile_context>

<pallas_src>
import functools
import math

import jax
import jax.numpy as jnp
from jax import lax
from jax.experimental import pallas as pl
from jax.experimental.pallas import tpu as pltpu

_LN_EPS = 1e-5
_GELU_C = math.sqrt(2.0 / math.pi)


def _layer_norm_f32(x_f32, scale_ref, shift_ref):
    """LayerNorm matching the PyTorch module: unbiased variance (torch.var), eps=1e-5."""
    e = x_f32.shape[-1]
    mean = jnp.mean(x_f32, axis=-1, keepdims=True)
    d = x_f32 - mean
    var = jnp.sum(d * d, axis=-1, keepdims=True) / (e - 1)
    inv = lax.rsqrt(var + _LN_EPS)
    return scale_ref[...].astype(jnp.float32) * (d * inv) + shift_ref[...].astype(jnp.float32)


def _attn_block_kernel(x_ref, g1_ref, s1_ref, wq_ref, wk_ref, wv_ref, wo_ref, bo_ref,
                       o_ref, *, num_heads):
    x = x_ref[0]                                       # (S, E)
    xf = x.astype(jnp.float32)
    s_len, emb = xf.shape
    head_dim = emb // num_heads
    scale = 1.0 / math.sqrt(head_dim)

    xn = _layer_norm_f32(xf, g1_ref, s1_ref).astype(wq_ref.dtype)

    q = jnp.dot(xn, wq_ref[...], preferred_element_type=jnp.float32)   # (S, E)
    k = jnp.dot(xn, wk_ref[...], preferred_element_type=jnp.float32)
    v = jnp.dot(xn, wv_ref[...], preferred_element_type=jnp.float32)

    # Causal mask: key position must not exceed query position.
    q_pos = lax.broadcasted_iota(jnp.int32, (s_len, s_len), 0)
    k_pos = lax.broadcasted_iota(jnp.int32, (s_len, s_len), 1)
    allowed = k_pos <= q_pos

    ctx_heads = []
    for h in range(num_heads):                         # static unroll over heads (2D ops only)
        lo = h * head_dim
        qh = q[:, lo:lo + head_dim]
        kh = k[:, lo:lo + head_dim]
        vh = v[:, lo:lo + head_dim]
        scores = lax.dot_general(qh, kh, (((1,), (1,)), ((), ())),
                                 preferred_element_type=jnp.float32) * scale
        scores = jnp.where(allowed, scores, -1e30)
        m = jnp.max(scores, axis=-1, keepdims=True)
        p = jnp.exp(scores - m)
        attn_w = p / jnp.sum(p, axis=-1, keepdims=True)
        ctx_heads.append(jnp.dot(attn_w, vh, preferred_element_type=jnp.float32))
    ctx = jnp.concatenate(ctx_heads, axis=-1)          # (S, E)

    out = jnp.dot(ctx.astype(wo_ref.dtype), wo_ref[...],
                  preferred_element_type=jnp.float32) + bo_ref[...].astype(jnp.float32)
    o_ref[0] = (out + xf).astype(o_ref.dtype)          # residual add


def _ffn_block_kernel(x_ref, g2_ref, s2_ref, w1_ref, b1_ref, w2_ref, b2_ref, o_ref):
    xf = x_ref[...].astype(jnp.float32)                # (TM, E)
    xn = _layer_norm_f32(xf, g2_ref, s2_ref).astype(w1_ref.dtype)

    # Linear(E -> 4E): operands keep their native dtype, accumulation in f32.
    h = jnp.dot(xn, w1_ref[...], preferred_element_type=jnp.float32)
    h = h + b1_ref[...].astype(jnp.float32)

    # tanh-approx GELU (matches the PyTorch GELU module), in f32.
    g = 0.5 * h * (1.0 + jnp.tanh(_GELU_C * (h + 0.044715 * (h * h * h))))

    # Linear(4E -> E)
    y = jnp.dot(g.astype(w2_ref.dtype), w2_ref[...], preferred_element_type=jnp.float32)
    y = y + b2_ref[...].astype(jnp.float32)

    o_ref[...] = (y + xf).astype(o_ref.dtype)          # residual add


def _round_up(a, b):
    return (a + b - 1) // b * b


def transformer_block(x, params, *, num_heads, tm=512):
    """x: (batch, seq, emb). Weights stored (in, out) so kernels compute x @ W + b."""
    batch, seq, emb = x.shape
    hidden = params["w1"].shape[1]

    g1 = params["g1"].reshape(1, emb)
    s1 = params["s1"].reshape(1, emb)
    g2 = params["g2"].reshape(1, emb)
    s2 = params["s2"].reshape(1, emb)
    bo = params["bo"].reshape(1, emb)
    b1 = params["b1"].reshape(1, hidden)
    b2 = params["b2"].reshape(1, emb)

    # ---- sub-block 1: x = x + MHA(LN1(x)); one batch row per grid step ----
    attn_out = pl.pallas_call(
        functools.partial(_attn_block_kernel, num_heads=num_heads),
        out_shape=jax.ShapeDtypeStruct((batch, seq, emb), x.dtype),
        grid=(batch,),
        in_specs=[
            pl.BlockSpec((1, seq, emb), lambda b: (b, 0, 0)),
            pl.BlockSpec((1, emb), lambda b: (0, 0)),
            pl.BlockSpec((1, emb), lambda b: (0, 0)),
            pl.BlockSpec((emb, emb), lambda b: (0, 0)),
            pl.BlockSpec((emb, emb), lambda b: (0, 0)),
            pl.BlockSpec((emb, emb), lambda b: (0, 0)),
            pl.BlockSpec((emb, emb), lambda b: (0, 0)),
            pl.BlockSpec((1, emb), lambda b: (0, 0)),
        ],
        out_specs=pl.BlockSpec((1, seq, emb), lambda b: (b, 0, 0)),
        compiler_params=pltpu.CompilerParams(dimension_semantics=("parallel",)),
    )(x, g1, s1, params["wq"], params["wk"], params["wv"], params["wo"], bo)

    # ---- sub-block 2: x = x + FFN(LN2(x)); tiled over M = batch*seq rows ----
    m = batch * seq
    tm_eff = min(tm, _round_up(m, 8))                  # >=8-aligned; 512 (128-aligned) at scale
    m_pad = _round_up(m, tm_eff)
    x2d = attn_out.reshape(m, emb)
    if m_pad != m:
        x2d = jnp.pad(x2d, ((0, m_pad - m), (0, 0)))

    x_bytes = jnp.dtype(x.dtype).itemsize
    w_bytes = (params["w1"].size + params["w2"].size) * jnp.dtype(params["w1"].dtype).itemsize
    cost = pl.CostEstimate(
        flops=4 * m_pad * emb * hidden,                # two matmuls @ 2*M*E*4E each
        transcendentals=m_pad * hidden,                # tanh inside GELU
        bytes_accessed=int(w_bytes + 2 * m_pad * emb * x_bytes),
    )
    # Resident weights + double-buffered x/out tiles + f32 hidden intermediate (+ headroom).
    vmem_est = w_bytes + 4 * tm_eff * emb * x_bytes + 2 * tm_eff * hidden * 4 + (2 << 20)
    cp_kwargs = dict(dimension_semantics=("parallel",))
    if vmem_est > (30 << 20):                          # above the ~32 MiB scoped default
        cp_kwargs["vmem_limit_bytes"] = int(min(vmem_est + vmem_est // 4, 64 << 20))

    out2d = pl.pallas_call(
        _ffn_block_kernel,
        out_shape=jax.ShapeDtypeStruct((m_pad, emb), x.dtype),
        grid=(m_pad // tm_eff,),
        in_specs=[
            pl.BlockSpec((tm_eff, emb), lambda i: (i, 0)),   # activation tile (pipelined)
            pl.BlockSpec((1, emb), lambda i: (0, 0)),        # LN2 scale (resident)
            pl.BlockSpec((1, emb), lambda i: (0, 0)),        # LN2 shift
            pl.BlockSpec((emb, hidden), lambda i: (0, 0)),   # W1 (resident)
            pl.BlockSpec((1, hidden), lambda i: (0, 0)),     # b1
            pl.BlockSpec((hidden, emb), lambda i: (0, 0)),   # W2 (resident)
            pl.BlockSpec((1, emb), lambda i: (0, 0)),        # b2
        ],
        out_specs=pl.BlockSpec((tm_eff, emb), lambda i: (i, 0)),
        compiler_params=pltpu.CompilerParams(**cp_kwargs),
        cost_estimate=cost,
    )(x2d, g2, s2, params["w1"], b1, params["w2"], b2)

    return out2d[:m].reshape(batch, seq, emb)


def _reference(x, p, num_heads):
    b, s, e = x.shape
    hd = e // num_heads

    def ln(v, scale, shift):
        mean = v.mean(-1, keepdims=True)
        var = jnp.sum((v - mean) ** 2, -1, keepdims=True) / (e - 1)   # unbiased, like torch.var
        return scale * (v - mean) / jnp.sqrt(var + _LN_EPS) + shift

    xn = ln(x, p["g1"], p["s1"])
    q = (xn @ p["wq"]).reshape(b, s, num_heads, hd).transpose(0, 2, 1, 3)
    k = (xn @ p["wk"]).reshape(b, s, num_heads, hd).transpose(0, 2, 1, 3)
    v = (xn @ p["wv"]).reshape(b, s, num_heads, hd).transpose(0, 2, 1, 3)
    scores = jnp.einsum("bhqd,bhkd->bhqk", q, k) / math.sqrt(hd)
    mask = jnp.triu(jnp.ones((s, s), dtype=bool), k=1)
    scores = jnp.where(mask, -jnp.inf, scores)
    w = jax.nn.softmax(scores, axis=-1)
    ctx = jnp.einsum("bhqk,bhkd->bhqd", w, v).transpose(0, 2, 1, 3).reshape(b, s, e)
    x = x + ctx @ p["wo"] + p["bo"]

    xn2 = ln(x, p["g2"], p["s2"])
    h = xn2 @ p["w1"] + p["b1"]
    g = 0.5 * h * (1.0 + jnp.tanh(_GELU_C * (h + 0.044715 * h ** 3)))
    return x + g @ p["w2"] + p["b2"]


if __name__ == "__main__":
    cfg = dict(emb_dim=32, context_length=8, n_heads=2, drop_rate=0.0, qkv_bias=False)
    batch, seq, emb = 2, cfg["context_length"], cfg["emb_dim"]
    hidden = 4 * emb
    nh = cfg["n_heads"]
    f32 = jnp.float32

    keys = jax.random.split(jax.random.PRNGKey(0), 14)
    x = jax.random.normal(keys[0], (batch, seq, emb), dtype=f32)
    params = {
        "wq": jax.random.normal(keys[1], (emb, emb), dtype=f32) * 0.02,
        "wk": jax.random.normal(keys[2], (emb, emb), dtype=f32) * 0.02,
        "wv": jax.random.normal(keys[3], (emb, emb), dtype=f32) * 0.02,
        "wo": jax.random.normal(keys[4], (emb, emb), dtype=f32) * 0.02,
        "bo": jax.random.normal(keys[5], (emb,), dtype=f32) * 0.02,
        "g1": 1.0 + 0.1 * jax.random.normal(keys[6], (emb,), dtype=f32),
        "s1": 0.1 * jax.random.normal(keys[7], (emb,), dtype=f32),
        "g2": 1.0 + 0.1 * jax.random.normal(keys[8], (emb,), dtype=f32),
        "s2": 0.1 * jax.random.normal(keys[9], (emb,), dtype=f32),
        "w1": jax.random.normal(keys[10], (emb, hidden), dtype=f32) * 0.02,
        "b1": jax.random.normal(keys[11], (hidden,), dtype=f32) * 0.02,
        "w2": jax.random.normal(keys[12], (hidden, emb), dtype=f32) * 0.02,
        "b2": jax.random.normal(keys[13], (emb,), dtype=f32) * 0.02,
    }

    out = transformer_block(x, params, num_heads=nh)
    out = jax.block_until_ready(out)

    ref = _reference(x, params, nh)
    assert out.shape == (batch, seq, emb)
    assert jnp.allclose(out, ref, atol=1e-4, rtol=1e-4), "mismatch vs reference"
    print("KERNEL_OK")
</pallas_src>

<mosaic_0001>
module attributes {stable_mosaic.version = 11 : i64} {
  func.func @_attn_block_kernel(%arg0: i32, %arg1: memref<1x8x32xf32, #tpu.memory_space<vmem>>, %arg2: memref<1x32xf32, #tpu.memory_space<vmem>>, %arg3: memref<1x32xf32, #tpu.memory_space<vmem>>, %arg4: memref<32x32xf32, #tpu.memory_space<vmem>>, %arg5: memref<32x32xf32, #tpu.memory_space<vmem>>, %arg6: memref<32x32xf32, #tpu.memory_space<vmem>>, %arg7: memref<32x32xf32, #tpu.memory_space<vmem>>, %arg8: memref<1x32xf32, #tpu.memory_space<vmem>>, %arg9: memref<1x8x32xf32, #tpu.memory_space<vmem>>) attributes {dimension_semantics = [#tpu.dimension_semantics<parallel>], iteration_bounds = array<i64: 2>, scalar_prefetch = 0 : i64, scratch_operands = 0 : i64, tpu.core_type = #tpu.core_type<tc>, window_params = [{transform_indices = @transform_0, window_bounds = array<i64: 1, 8, 32>}, {pipeline_mode = #tpu.pipeline_mode<synchronous>, transform_indices = @transform_1, window_bounds = array<i64: 1, 32>}, {pipeline_mode = #tpu.pipeline_mode<synchronous>, transform_indices = @transform_2, window_bounds = array<i64: 1, 32>}, {pipeline_mode = #tpu.pipeline_mode<synchronous>, transform_indices = @transform_3, window_bounds = array<i64: 32, 32>}, {pipeline_mode = #tpu.pipeline_mode<synchronous>, transform_indices = @transform_4, window_bounds = array<i64: 32, 32>}, {pipeline_mode = #tpu.pipeline_mode<synchronous>, transform_indices = @transform_5, window_bounds = array<i64: 32, 32>}, {pipeline_mode = #tpu.pipeline_mode<synchronous>, transform_indices = @transform_6, window_bounds = array<i64: 32, 32>}, {pipeline_mode = #tpu.pipeline_mode<synchronous>, transform_indices = @transform_7, window_bounds = array<i64: 1, 32>}, {transform_indices = @transform_8, window_bounds = array<i64: 1, 8, 32>}]} {
    %c0 = arith.constant 0 : index
    %c0_0 = arith.constant 0 : index
    %c0_1 = arith.constant 0 : index
    %0 = vector.load %arg1[%c0, %c0_0, %c0_1] : memref<1x8x32xf32, #tpu.memory_space<vmem>>, vector<1x8x32xf32>
    %1 = vector.shape_cast %0 : vector<1x8x32xf32> to vector<8x32xf32>
    %cst = arith.constant dense<0.000000e+00> : vector<8xf32>
    %2 = vector.multi_reduction <add>, %1, %cst [1] : vector<8x32xf32> to vector<8xf32>
    %3 = vector.shape_cast %2 : vector<8xf32> to vector<8x1xf32>
    %cst_2 = arith.constant 3.200000e+01 : f32
    %4 = vector.broadcast %cst_2 : f32 to vector<8x1xf32>
    %5 = arith.divf %3, %4 : vector<8x1xf32>
    %6 = vector.broadcast %5 : vector<8x1xf32> to vector<8x32xf32>
    %7 = arith.subf %1, %6 : vector<8x32xf32>
    %8 = arith.mulf %7, %7 : vector<8x32xf32>
    %cst_3 = arith.constant dense<0.000000e+00> : vector<8xf32>
    %9 = vector.multi_reduction <add>, %8, %cst_3 [1] : vector<8x32xf32> to vector<8xf32>
    %10 = vector.shape_cast %9 : vector<8xf32> to vector<8x1xf32>
    %cst_4 = arith.constant 3.100000e+01 : f32
    %11 = vector.broadcast %cst_4 : f32 to vector<8x1xf32>
    %12 = arith.divf %10, %11 : vector<8x1xf32>
    %cst_5 = arith.constant 9.99999974E-6 : f32
    %13 = vector.broadcast %cst_5 : f32 to vector<8x1xf32>
    %14 = arith.addf %12, %13 : vector<8x1xf32>
    %15 = math.rsqrt %14 : vector<8x1xf32>
    %c0_6 = arith.constant 0 : index
    %c0_7 = arith.constant 0 : index
    %16 = vector.load %arg2[%c0_6, %c0_7] : memref<1x32xf32, #tpu.memory_space<vmem>>, vector<1x32xf32>
    %17 = vector.broadcast %15 : vector<8x1xf32> to vector<8x32xf32>
    %18 = arith.mulf %7, %17 : vector<8x32xf32>
    %19 = vector.broadcast %16 : vector<1x32xf32> to vector<8x32xf32>
    %20 = arith.mulf %19, %18 : vector<8x32xf32>
    %c0_8 = arith.constant 0 : index
    %c0_9 = arith.constant 0 : index
    %21 = vector.load %arg3[%c0_8, %c0_9] : memref<1x32xf32, #tpu.memory_space<vmem>>, vector<1x32xf32>
    %22 = vector.broadcast %21 : vector<1x32xf32> to vector<8x32xf32>
    %23 = arith.addf %20, %22 : vector<8x32xf32>
    %c0_10 = arith.constant 0 : index
    %c0_11 = arith.constant 0 : index
    %24 = vector.load %arg4[%c0_10, %c0_11] : memref<32x32xf32, #tpu.memory_space<vmem>>, vector<32x32xf32>
    %cst_12 = arith.constant dense<0.000000e+00> : vector<8x32xf32>
    %25 = tpu.matmul %23, %24, %cst_12 {dimension_numbers = #tpu.dot_dimension_numbers<[1], [0], [0], [1], [0, 0, 1, 1], [], []>} : vector<8x32xf32>, vector<32x32xf32>, vector<8x32xf32> -> vector<8x32xf32>
    %c0_13 = arith.constant 0 : index
    %c0_14 = arith.constant 0 : index
    %26 = vector.load %arg5[%c0_13, %c0_14] : memref<32x32xf32, #tpu.memory_space<vmem>>, vector<32x32xf32>
    %cst_15 = arith.constant dense<0.000000e+00> : vector<8x32xf32>
    %27 = tpu.matmul %23, %26, %cst_15 {dimension_numbers = #tpu.dot_dimension_numbers<[1], [0], [0], [1], [0, 0, 1, 1], [], []>} : vector<8x32xf32>, vector<32x32xf32>, vector<8x32xf32> -> vector<8x32xf32>
    %c0_16 = arith.constant 0 : index
    %c0_17 = arith.constant 0 : index
    %28 = vector.load %arg6[%c0_16, %c0_17] : memref<32x32xf32, #tpu.memory_space<vmem>>, vector<32x32xf32>
    %cst_18 = arith.constant dense<0.000000e+00> : vector<8x32xf32>
    %29 = tpu.matmul %23, %28, %cst_18 {dimension_numbers = #tpu.dot_dimension_numbers<[1], [0], [0], [1], [0, 0, 1, 1], [], []>} : vector<8x32xf32>, vector<32x32xf32>, vector<8x32xf32> -> vector<8x32xf32>
    %30 = tpu.iota {dimensions = array<i32: 0>} : vector<8x8xi32>
    %31 = tpu.iota {dimensions = array<i32: 1>} : vector<8x8xi32>
    %32 = arith.cmpi sle, %31, %30 : vector<8x8xi32>
    %33 = vector.extract_strided_slice %25 {offsets = [0, 0], sizes = [8, 16], strides = [1, 1]} : vector<8x32xf32> to vector<8x16xf32>
    %34 = vector.extract_strided_slice %27 {offsets = [0, 0], sizes = [8, 16], strides = [1, 1]} : vector<8x32xf32> to vector<8x16xf32>
    %35 = vector.extract_strided_slice %29 {offsets = [0, 0], sizes = [8, 16], strides = [1, 1]} : vector<8x32xf32> to vector<8x16xf32>
    %cst_19 = arith.constant dense<0.000000e+00> : vector<8x8xf32>
    %36 = tpu.matmul %33, %34, %cst_19 {dimension_numbers = #tpu.dot_dimension_numbers<[1], [1], [0], [0], [0, 0, 1, 0], [], []>} : vector<8x16xf32>, vector<8x16xf32>, vector<8x8xf32> -> vector<8x8xf32>
    %cst_20 = arith.constant 2.500000e-01 : f32
    %37 = vector.broadcast %cst_20 : f32 to vector<8x8xf32>
    %38 = arith.mulf %36, %37 : vector<8x8xf32>
    %cst_21 = arith.constant -1.000000e+30 : f32
    %39 = vector.broadcast %cst_21 : f32 to vector<8x8xf32>
    %40 = arith.select %32, %38, %39 : vector<8x8xi1>, vector<8x8xf32>
    %cst_22 = arith.constant dense<0xFF800000> : vector<8xf32>
    %41 = vector.multi_reduction <maximumf>, %40, %cst_22 [1] : vector<8x8xf32> to vector<8xf32>
    %42 = vector.shape_cast %41 : vector<8xf32> to vector<8x1xf32>
    %43 = vector.broadcast %42 : vector<8x1xf32> to vector<8x8xf32>
    %44 = arith.subf %40, %43 : vector<8x8xf32>
    %45 = math.exp %44 : vector<8x8xf32>
    %cst_23 = arith.constant dense<0.000000e+00> : vector<8xf32>
    %46 = vector.multi_reduction <add>, %45, %cst_23 [1] : vector<8x8xf32> to vector<8xf32>
    %47 = vector.shape_cast %46 : vector<8xf32> to vector<8x1xf32>
    %48 = vector.broadcast %47 : vector<8x1xf32> to vector<8x8xf32>
    %49 = arith.divf %45, %48 : vector<8x8xf32>
    %cst_24 = arith.constant dense<0.000000e+00> : vector<8x16xf32>
    %50 = tpu.matmul %49, %35, %cst_24 {dimension_numbers = #tpu.dot_dimension_numbers<[1], [0], [0], [1], [0, 0, 1, 1], [], []>} : vector<8x8xf32>, vector<8x16xf32>, vector<8x16xf32> -> vector<8x16xf32>
    %51 = vector.extract_strided_slice %25 {offsets = [0, 16], sizes = [8, 16], strides = [1, 1]} : vector<8x32xf32> to vector<8x16xf32>
    %52 = vector.extract_strided_slice %27 {offsets = [0, 16], sizes = [8, 16], strides = [1, 1]} : vector<8x32xf32> to vector<8x16xf32>
    %53 = vector.extract_strided_slice %29 {offsets = [0, 16], sizes = [8, 16], strides = [1, 1]} : vector<8x32xf32> to vector<8x16xf32>
    %cst_25 = arith.constant dense<0.000000e+00> : vector<8x8xf32>
    %54 = tpu.matmul %51, %52, %cst_25 {dimension_numbers = #tpu.dot_dimension_numbers<[1], [1], [0], [0], [0, 0, 1, 0], [], []>} : vector<8x16xf32>, vector<8x16xf32>, vector<8x8xf32> -> vector<8x8xf32>
    %cst_26 = arith.constant 2.500000e-01 : f32
    %55 = vector.broadcast %cst_26 : f32 to vector<8x8xf32>
    %56 = arith.mulf %54, %55 : vector<8x8xf32>
    %cst_27 = arith.constant -1.000000e+30 : f32
    %57 = vector.broadcast %cst_27 : f32 to vector<8x8xf32>
    %58 = arith.select %32, %56, %57 : vector<8x8xi1>, vector<8x8xf32>
    %cst_28 = arith.constant dense<0xFF800000> : vector<8xf32>
    %59 = vector.multi_reduction <maximumf>, %58, %cst_28 [1] : vector<8x8xf32> to vector<8xf32>
    %60 = vector.shape_cast %59 : vector<8xf32> to vector<8x1xf32>
    %61 = vector.broadcast %60 : vector<8x1xf32> to vector<8x8xf32>
    %62 = arith.subf %58, %61 : vector<8x8xf32>
    %63 = math.exp %62 : vector<8x8xf32>
    %cst_29 = arith.constant dense<0.000000e+00> : vector<8xf32>
    %64 = vector.multi_reduction <add>, %63, %cst_29 [1] : vector<8x8xf32> to vector<8xf32>
    %65 = vector.shape_cast %64 : vector<8xf32> to vector<8x1xf32>
    %66 = vector.broadcast %65 : vector<8x1xf32> to vector<8x8xf32>
    %67 = arith.divf %63, %66 : vector<8x8xf32>
    %cst_30 = arith.constant dense<0.000000e+00> : vector<8x16xf32>
    %68 = tpu.matmul %67, %53, %cst_30 {dimension_numbers = #tpu.dot_dimension_numbers<[1], [0], [0], [1], [0, 0, 1, 1], [], []>} : vector<8x8xf32>, vector<8x16xf32>, vector<8x16xf32> -> vector<8x16xf32>
    %69 = tpu.concatenate %50, %68 in 1 : vector<8x16xf32>, vector<8x16xf32> -> vector<8x32xf32>
    %c0_31 = arith.constant 0 : index
    %c0_32 = arith.constant 0 : index
    %70 = vector.load %arg7[%c0_31, %c0_32] : memref<32x32xf32, #tpu.memory_space<vmem>>, vector<32x32xf32>
    %cst_33 = arith.constant dense<0.000000e+00> : vector<8x32xf32>
    %71 = tpu.matmul %69, %70, %cst_33 {dimension_numbers = #tpu.dot_dimension_numbers<[1], [0], [0], [1], [0, 0, 1, 1], [], []>} : vector<8x32xf32>, vector<32x32xf32>, vector<8x32xf32> -> vector<8x32xf32>
    %c0_34 = arith.constant 0 : index
    %c0_35 = arith.constant 0 : index
    %72 = vector.load %arg8[%c0_34, %c0_35] : memref<1x32xf32, #tpu.memory_space<vmem>>, vector<1x32xf32>
    %73 = vector.broadcast %72 : vector<1x32xf32> to vector<8x32xf32>
    %74 = arith.addf %71, %73 : vector<8x32xf32>
    %75 = arith.addf %74, %1 : vector<8x32xf32>
    %c0_36 = arith.constant 0 : index
    %c0_37 = arith.constant 0 : index
    %c0_38 = arith.constant 0 : index
    %76 = vector.load %arg9[%c0_36, %c0_37, %c0_38] : memref<1x8x32xf32, #tpu.memory_space<vmem>>, vector<1x8x32xf32>
    %77 = vector.shape_cast %76 : vector<1x8x32xf32> to vector<8x32xf32>
    %78 = vector.shape_cast %75 : vector<8x32xf32> to vector<1x8x32xf32>
    tpu.vector_store %arg9[%c0_36, %c0_37, %c0_38], %78 {strides = array<i32>} : memref<1x8x32xf32, #tpu.memory_space<vmem>>, vector<1x8x32xf32>,
    return
  }
  func.func @transform_0(%arg0: i32) -> (i32, i32, i32) {
    %c0_i32 = arith.constant 0 : i32
    %c0_i32_0 = arith.constant 0 : i32
    %c0_i32_1 = arith.constant 0 : i32
    return %arg0, %c0_i32, %c0_i32_0 : i32, i32, i32
  }
  func.func @transform_1(%arg0: i32) -> (i32, i32) {
    %c0_i32 = arith.constant 0 : i32
    %c0_i32_0 = arith.constant 0 : i32
    %c0_i32_1 = arith.constant 0 : i32
    return %c0_i32, %c0_i32_0 : i32, i32
  }
  func.func @transform_2(%arg0: i32) -> (i32, i32) {
    %c0_i32 = arith.constant 0 : i32
    %c0_i32_0 = arith.constant 0 : i32
    %c0_i32_1 = arith.constant 0 : i32
    return %c0_i32, %c0_i32_0 : i32, i32
  }
  func.func @transform_3(%arg0: i32) -> (i32, i32) {
    %c0_i32 = arith.constant 0 : i32
    %c0_i32_0 = arith.constant 0 : i32
    %c0_i32_1 = arith.constant 0 : i32
    return %c0_i32, %c0_i32_0 : i32, i32
  }
  func.func @transform_4(%arg0: i32) -> (i32, i32) {
    %c0_i32 = arith.constant 0 : i32
    %c0_i32_0 = arith.constant 0 : i32
    %c0_i32_1 = arith.constant 0 : i32
    return %c0_i32, %c0_i32_0 : i32, i32
  }
  func.func @transform_5(%arg0: i32) -> (i32, i32) {
    %c0_i32 = arith.constant 0 : i32
    %c0_i32_0 = arith.constant 0 : i32
    %c0_i32_1 = arith.constant 0 : i32
    return %c0_i32, %c0_i32_0 : i32, i32
  }
  func.func @transform_6(%arg0: i32) -> (i32, i32) {
    %c0_i32 = arith.constant 0 : i32
    %c0_i32_0 = arith.constant 0 : i32
    %c0_i32_1 = arith.constant 0 : i32
    return %c0_i32, %c0_i32_0 : i32, i32
  }
  func.func @transform_7(%arg0: i32) -> (i32, i32) {
    %c0_i32 = arith.constant 0 : i32
    %c0_i32_0 = arith.constant 0 : i32
    %c0_i32_1 = arith.constant 0 : i32
    return %c0_i32, %c0_i32_0 : i32, i32
  }
  func.func @transform_8(%arg0: i32) -> (i32, i32, i32) {
    %c0_i32 = arith.constant 0 : i32
    %c0_i32_0 = arith.constant 0 : i32
    %c0_i32_1 = arith.constant 0 : i32
    return %arg0, %c0_i32, %c0_i32_0 : i32, i32, i32
  }
}

</mosaic_0001>

<llo_original>
// kernel: tpu_custom_call.1
$region0: #{tpu_custom_call.1}
  #allocation0 [shape = 'u32[]', space=smem, size = 0x4, offset = 0x4, fixed_abs, tag = 'smem constant byte address 0x4 - core index']
  #allocation1 [shape = 'u32[144,128]{1,0:T(1,128)}', space=vmem, size = 0x12000, scoped, tag = 'internal scratch']
  %s0 = inlined_call_operand.hbm [shape: f32[2,8,32], index: 0, kind: input, shape index: {}]
  %s1 = inlined_call_operand.vmem [shape: f32[1,32], index: 1, kind: input, shape index: {}]
  %s2 = inlined_call_operand.vmem [shape: f32[1,32], index: 2, kind: input, shape index: {}]
  %s3 = inlined_call_operand.hbm [shape: f32[32,32], index: 3, kind: input, shape index: {}]
  %s4 = inlined_call_operand.hbm [shape: f32[32,32], index: 4, kind: input, shape index: {}]
  %s5 = inlined_call_operand.hbm [shape: f32[32,32], index: 5, kind: input, shape index: {}]
  %s6 = inlined_call_operand.hbm [shape: f32[32,32], index: 6, kind: input, shape index: {}]
  %s7 = inlined_call_operand.vmem [shape: f32[1,32], index: 7, kind: input, shape index: {}]
  %s8 = inlined_call_operand.hbm [shape: f32[2,8,32], index: 8, kind: output, shape index: {}]
  %s9 = sld [smem:[#allocation0]]
  $region85: #{tpu_custom_call.1} parent=0
    _
  %s11 = ssub.s32 1, %s9
  %s12 = scalar_select 0, %s11, %s9
  $region1: #{tpu_custom_call.1} parent=0
    #allocation2 [shape = 'u8[8192]{0}', space=vmem, size = 0x2000, scoped, tag = 'input window, operand 0']
    #allocation3 [shape = 's32[2]{0}', space=sflag, size = 0x8, scoped, tag = 'scoped memory for tpu_custom_call.1']
    #allocation4 [shape = 's32[2]{0}', space=sflag, size = 0x8, scoped, tag = 'scoped memory for tpu_custom_call.1']
    #allocation5 [shape = 'u8[16384]{0}', space=vmem, size = 0x4000, scoped, tag = 'input window, operand 3, single buffered']
    #allocation6 [shape = 's32[1]{0}', space=sflag, size = 0x4, scoped, tag = 'scoped memory for tpu_custom_call.1']
    #allocation7 [shape = 'u8[16384]{0}', space=vmem, size = 0x4000, scoped, tag = 'input window, operand 4, single buffered']
    #allocation8 [shape = 'u8[16384]{0}', space=vmem, size = 0x4000, scoped, tag = 'input window, operand 5, single buffered']
    #allocation9 [shape = 's32[1]{0}', space=sflag, size = 0x4, scoped, tag = 'scoped memory for tpu_custom_call.1']
    #allocation10 [shape = 'u8[16384]{0}', space=vmem, size = 0x4000, scoped, tag = 'input window, operand 6, single buffered']
    #allocation11 [shape = 'u8[8192]{0}', space=vmem, size = 0x2000, scoped, tag = 'output window, operand 0']
    %13 = vsyncpa [#allocation3], 0
    %s14 = scalar_lea.sflag [#allocation3], 1
    %15 = vsyncpa %s14, 0
    %16 = vsyncpa [#allocation6], 0
    %17 = vsyncpa [#allocation9], 0
    %18 = vsyncpa [#allocation4], 0
    %s19 = scalar_lea.sflag [#allocation4], 1
    %20 = vsyncpa %s19, 0
    loop: start=0, step=1, limit=4
    $region2: #{tpu_custom_call.1} parent=1 // loop_pre_header
      _
    $region3: #{tpu_custom_call.1} parent=1 // loop_header
      %s22 = sphi 0, %s26
      %p23 = scmp.ge.s32.totalorder %s22, 4
      %s32 = sphi 0, %s34
      %s35 = sphi 0, %s32
      %s36 = sphi 0, %s35
      %s52 = sphi 0, %s36
      %s56 = sphi 0, %s56
      %s58 = sphi 0, %s56
      %s59 = sphi 0, %s58
      %s73 = sphi 0, %s59
      %s77 = sphi 0, %s77
      %s79 = sphi 0, %s77
      %s80 = sphi 0, %s79
      %s94 = sphi 0, %s80
      %s98 = sphi 0, %s98
      %s100 = sphi 0, %s98
      %s101 = sphi 0, %s100
      %s115 = sphi 0, %s101
      %s119 = sphi 0, %s119
      %s121 = sphi 0, %s119
      %s122 = sphi 0, %s121
      %s136 = sphi 0, %s122
      %s140 = sphi 0, %s140
      %s142 = sphi 0, %s140
      %s143 = sphi 0, %s142
      %s157 = sphi 0, %s143
      %s161 = sphi 0, %s161
      %s163 = sphi 0, %s161
      %s164 = sphi 0, %s163
      %s178 = sphi 0, %s164
      %s182 = sphi 0, %s182
      %s184 = sphi 0, %s182
      %s185 = sphi 0, %s184
      %s199 = sphi 0, %s185
      %s205 = sphi 0, %s207
      %s208 = sphi 0, %s205
      %s209 = sphi 0, %s208
      %s225 = sphi 0, %s209
    $region4: #{tpu_custom_call.1} parent=1 // loop_header_branch
      %25 = sbr.rel (%p23) target = $region8
    $region5: #{tpu_custom_call.1} parent=1 // loop_body
      %s27 = ssub.s32 %s22, 1
      %s28 = ssub.s32 %s22, 2
      %s29 = sadd.s32 %s22, 1
      %s30 = ssub.s32 %s22, %s29
      %p31 = scmp.eq.s32.totalorder %s30, 0
      %s33 = sadd.s32 %s32, 1
      %s34 = scalar_select %p31, %s32, %s33
      %p37 = pneg %p31
      %p38 = scmp.eq.s32.totalorder %s22, 1
      %p39 = por %p37, %p38
      %p40 = scmp.ne.s32.totalorder %s32, %s35
      %p41 = scmp.eq.s32.totalorder %s22, 0
      %p42 = por %p40, %p41
      %p43 = scmp.ne.s32.totalorder %s32, %s35
      %p44 = scmp.eq.s32.totalorder %s27, 1
      %p45 = por %p43, %p44
      %p46 = scmp.ne.s32.totalorder %s35, %s36
      %p47 = scmp.eq.s32.totalorder %s27, 0
      %p48 = por %p46, %p47
      %p49 = scmp.ne.s32.totalorder %s35, %s36
      %p50 = scmp.eq.s32.totalorder %s28, 1
      %p51 = por %p49, %p50
      %p53 = scmp.ne.s32.totalorder %s36, %s52
      %p54 = scmp.eq.s32.totalorder %s28, 0
      %p55 = por %p53, %p54
      %s57 = sadd.s32 %s56, 1
      %p60 = scmp.eq.s32.totalorder %s22, 1
      %p61 = scmp.ne.s32.totalorder %s56, %s58
      %p62 = scmp.eq.s32.totalorder %s22, 0
      %p63 = por %p61, %p62
      %p64 = scmp.ne.s32.totalorder %s56, %s58
      %p65 = scmp.eq.s32.totalorder %s27, 1
      %p66 = por %p64, %p65
      %p67 = scmp.ne.s32.totalorder %s58, %s59
      %p68 = scmp.eq.s32.totalorder %s27, 0
      %p69 = por %p67, %p68
      %p70 = scmp.ne.s32.totalorder %s58, %s59
      %p71 = scmp.eq.s32.totalorder %s28, 1
      %p72 = por %p70, %p71
      %p74 = scmp.ne.s32.totalorder %s59, %s73
      %p75 = scmp.eq.s32.totalorder %s28, 0
      %p76 = por %p74, %p75
      %s78 = sadd.s32 %s77, 1
      %p81 = scmp.eq.s32.totalorder %s22, 1
      %p82 = scmp.ne.s32.totalorder %s77, %s79
      %p83 = scmp.eq.s32.totalorder %s22, 0
      %p84 = por %p82, %p83
      %p85 = scmp.ne.s32.totalorder %s77, %s79
      %p86 = scmp.eq.s32.totalorder %s27, 1
      %p87 = por %p85, %p86
      %p88 = scmp.ne.s32.totalorder %s79, %s80
      %p89 = scmp.eq.s32.totalorder %s27, 0
      %p90 = por %p88, %p89
      %p91 = scmp.ne.s32.totalorder %s79, %s80
      %p92 = scmp.eq.s32.totalorder %s28, 1
      %p93 = por %p91, %p92
      %p95 = scmp.ne.s32.totalorder %s80, %s94
      %p96 = scmp.eq.s32.totalorder %s28, 0
      %p97 = por %p95, %p96
      %s99 = sadd.s32 %s98, 1
      %p102 = scmp.eq.s32.totalorder %s22, 1
      %p103 = scmp.ne.s32.totalorder %s98, %s100
      %p104 = scmp.eq.s32.totalorder %s22, 0
      %p105 = por %p103, %p104
      %p106 = scmp.ne.s32.totalorder %s98, %s100
      %p107 = scmp.eq.s32.totalorder %s27, 1
      %p108 = por %p106, %p107
      %p109 = scmp.ne.s32.totalorder %s100, %s101
      %p110 = scmp.eq.s32.totalorder %s27, 0
      %p111 = por %p109, %p110
      %p112 = scmp.ne.s32.totalorder %s100, %s101
      %p113 = scmp.eq.s32.totalorder %s28, 1
      %p114 = por %p112, %p113
      %p116 = scmp.ne.s32.totalorder %s101, %s115
      %p117 = scmp.eq.s32.totalorder %s28, 0
      %p118 = por %p116, %p117
      %s120 = sadd.s32 %s119, 1
      %p123 = scmp.eq.s32.totalorder %s22, 1
      %p124 = scmp.ne.s32.totalorder %s119, %s121
      %p125 = scmp.eq.s32.totalorder %s22, 0
      %p126 = por %p124, %p125
      %p127 = scmp.ne.s32.totalorder %s119, %s121
      %p128 = scmp.eq.s32.totalorder %s27, 1
      %p129 = por %p127, %p128
      %p130 = scmp.ne.s32.totalorder %s121, %s122
      %p131 = scmp.eq.s32.totalorder %s27, 0
      %p132 = por %p130, %p131
      %p133 = scmp.ne.s32.totalorder %s121, %s122
      %p134 = scmp.eq.s32.totalorder %s28, 1
      %p135 = por %p133, %p134
      %p137 = scmp.ne.s32.totalorder %s122, %s136
      %p138 = scmp.eq.s32.totalorder %s28, 0
      %p139 = por %p137, %p138
      %s141 = sadd.s32 %s140, 1
      %p144 = scmp.eq.s32.totalorder %s22, 1
      %p145 = scmp.ne.s32.totalorder %s140, %s142
      %p146 = scmp.eq.s32.totalorder %s22, 0
      %p147 = por %p145, %p146
      %p148 = scmp.ne.s32.totalorder %s140, %s142
      %p149 = scmp.eq.s32.totalorder %s27, 1
      %p150 = por %p148, %p149
      %p151 = scmp.ne.s32.totalorder %s142, %s143
      %p152 = scmp.eq.s32.totalorder %s27, 0
      %p153 = por %p151, %p152
      %p154 = scmp.ne.s32.totalorder %s142, %s143
      %p155 = scmp.eq.s32.totalorder %s28, 1
      %p156 = por %p154, %p155
      %p158 = scmp.ne.s32.totalorder %s143, %s157
      %p159 = scmp.eq.s32.totalorder %s28, 0
      %p160 = por %p158, %p159
      %s162 = sadd.s32 %s161, 1
      %p165 = scmp.eq.s32.totalorder %s22, 1
      %p166 = scmp.ne.s32.totalorder %s161, %s163
      %p167 = scmp.eq.s32.totalorder %s22, 0
      %p168 = por %p166, %p167
      %p169 = scmp.ne.s32.totalorder %s161, %s163
      %p170 = scmp.eq.s32.totalorder %s27, 1
      %p171 = por %p169, %p170
      %p172 = scmp.ne.s32.totalorder %s163, %s164
      %p173 = scmp.eq.s32.totalorder %s27, 0
      %p174 = por %p172, %p173
      %p175 = scmp.ne.s32.totalorder %s163, %s164
      %p176 = scmp.eq.s32.totalorder %s28, 1
      %p177 = por %p175, %p176
      %p179 = scmp.ne.s32.totalorder %s164, %s178
      %p180 = scmp.eq.s32.totalorder %s28, 0
      %p181 = por %p179, %p180
      %s183 = sadd.s32 %s182, 1
      %p186 = scmp.eq.s32.totalorder %s22, 1
      %p187 = scmp.ne.s32.totalorder %s182, %s184
      %p188 = scmp.eq.s32.totalorder %s22, 0
      %p189 = por %p187, %p188
      %p190 = scmp.ne.s32.totalorder %s182, %s184
      %p191 = scmp.eq.s32.totalorder %s27, 1
      %p192 = por %p190, %p191
      %p193 = scmp.ne.s32.totalorder %s184, %s185
      %p194 = scmp.eq.s32.totalorder %s27, 0
      %p195 = por %p193, %p194
      %p196 = scmp.ne.s32.totalorder %s184, %s185
      %p197 = scmp.eq.s32.totalorder %s28, 1
      %p198 = por %p196, %p197
      %p200 = scmp.ne.s32.totalorder %s185, %s199
      %p201 = scmp.eq.s32.totalorder %s28, 0
      %p202 = por %p200, %p201
      %s203 = ssub.s32 %s22, %s29
      %p204 = scmp.eq.s32.totalorder %s203, 0
      %s206 = sadd.s32 %s205, 1
      %s207 = scalar_select %p204, %s205, %s206
      %p210 = pneg %p204
      %p211 = scmp.eq.s32.totalorder %s22, 1
      %p212 = por %p210, %p211
      %p213 = scmp.ne.s32.totalorder %s205, %s208
      %p214 = scmp.eq.s32.totalorder %s22, 0
      %p215 = por %p213, %p214
      %p216 = scmp.ne.s32.totalorder %s205, %s208
      %p217 = scmp.eq.s32.totalorder %s27, 1
      %p218 = por %p216, %p217
      %p219 = scmp.ne.s32.totalorder %s208, %s209
      %p220 = scmp.eq.s32.totalorder %s27, 0
      %p221 = por %p219, %p220
      %p222 = scmp.ne.s32.totalorder %s208, %s209
      %p223 = scmp.eq.s32.totalorder %s28, 1
      %p224 = por %p222, %p223
      %p226 = scmp.ne.s32.totalorder %s209, %s225
      %p227 = scmp.eq.s32.totalorder %s28, 0
      %p228 = por %p226, %p227
      %p229 = scmp.le.s32.totalorder 1, %s22
      %p230 = scmp.lt.s32.totalorder %s22, 3
      %p231 = pnand %p229, %p230
      %p232 = pneg %p231
      // Predicated region
      $region9: #{tpu_custom_call.1} parent=5 // pred_check
        _
      $region10: #{tpu_custom_call.1} parent=5 // pred_check_branch
        %234 = sbr.rel (%p231) target = $region12
      $region11: #{tpu_custom_call.1} parent=5 // pred_region
        %s235 = ssub.s32 %s22, 1
        // Predicated region
        $region13: #{tpu_custom_call.1} parent=11 // pred_check
          %p236 = pneg %p69
        $region14: #{tpu_custom_call.1} parent=11 // pred_check_branch
          %238 = sbr.rel (%p236) target = $region16
        $region15: #{tpu_custom_call.1} parent=11 // pred_region
          _
        $region16: #{tpu_custom_call.1} parent=11 // pred_fallthru
          _
        // Predicated region
        $region17: #{tpu_custom_call.1} parent=11 // pred_check
          %p239 = pneg %p90
        $region18: #{tpu_custom_call.1} parent=11 // pred_check_branch
          %241 = sbr.rel (%p239) target = $region20
        $region19: #{tpu_custom_call.1} parent=11 // pred_region
          _
        $region20: #{tpu_custom_call.1} parent=11 // pred_fallthru
          _
        // Predicated region
        $region21: #{tpu_custom_call.1} parent=11 // pred_check
          %p242 = pneg %p111
        $region22: #{tpu_custom_call.1} parent=11 // pred_check_branch
          %244 = sbr.rel (%p242) target = $region24
        $region23: #{tpu_custom_call.1} parent=11 // pred_region
          %s246 = ssub.s32 512, 512
          %247 = vsyncadd [#allocation6], %s246
          %s248 = sshll.u32 [#allocation5], 4
          %s249 = int_to_ptr.vmem [resolvable:$true] %s248
          %254 = dma.hbm_to_vmem [thread:$0]  %s3, 512, %s249, [#allocation6], 128, 128, 8
        $region24: #{tpu_custom_call.1} parent=11 // pred_fallthru
          _
        // Predicated region
        $region25: #{tpu_custom_call.1} parent=11 // pred_check
          %p255 = pneg %p132
        $region26: #{tpu_custom_call.1} parent=11 // pred_check_branch
          %257 = sbr.rel (%p255) target = $region28
        $region27: #{tpu_custom_call.1} parent=11 // pred_region
          %s259 = ssub.s32 512, 512
          %260 = vsyncadd [#allocation6], %s259
          %s261 = sshll.u32 [#allocation7], 4
          %s262 = int_to_ptr.vmem [resolvable:$true] %s261
          %267 = dma.hbm_to_vmem [thread:$0]  %s4, 512, %s262, [#allocation6], 128, 128, 8
        $region28: #{tpu_custom_call.1} parent=11 // pred_fallthru
          _
        // Predicated region
        $region29: #{tpu_custom_call.1} parent=11 // pred_check
          %p268 = pneg %p153
        $region30: #{tpu_custom_call.1} parent=11 // pred_check_branch
          %270 = sbr.rel (%p268) target = $region32
        $region31: #{tpu_custom_call.1} parent=11 // pred_region
          %s272 = ssub.s32 512, 512
          %273 = vsyncadd [#allocation9], %s272
          %s274 = sshll.u32 [#allocation8], 4
          %s275 = int_to_ptr.vmem [resolvable:$true] %s274
          %280 = dma.hbm_to_vmem [thread:$0]  %s5, 512, %s275, [#allocation9], 128, 128, 8
        $region32: #{tpu_custom_call.1} parent=11 // pred_fallthru
          _
        // Predicated region
        $region33: #{tpu_custom_call.1} parent=11 // pred_check
          %p281 = pneg %p174
        $region34: #{tpu_custom_call.1} parent=11 // pred_check_branch
          %283 = sbr.rel (%p281) target = $region36
        $region35: #{tpu_custom_call.1} parent=11 // pred_region
          %s285 = ssub.s32 512, 512
          %286 = vsyncadd [#allocation9], %s285
          %s287 = sshll.u32 [#allocation10], 4
          %s288 = int_to_ptr.vmem [resolvable:$true] %s287
          %293 = dma.hbm_to_vmem [thread:$0]  %s6, 512, %s288, [#allocation9], 128, 128, 8
        $region36: #{tpu_custom_call.1} parent=11 // pred_fallthru
          _
        // Predicated region
        $region37: #{tpu_custom_call.1} parent=11 // pred_check
          %p294 = pneg %p195
        $region38: #{tpu_custom_call.1} parent=11 // pred_check_branch
          %296 = sbr.rel (%p294) target = $region40
        $region39: #{tpu_custom_call.1} parent=11 // pred_region
          _
        $region40: #{tpu_custom_call.1} parent=11 // pred_fallthru
          _
      $region12: #{tpu_custom_call.1} parent=5 // pred_fallthru
        _
      %p297 = scmp.lt.s32.totalorder %s22, 2
      // Predicated region
      $region41: #{tpu_custom_call.1} parent=5 // pred_check
        %p298 = pneg %p297
      $region42: #{tpu_custom_call.1} parent=5 // pred_check_branch
        %300 = sbr.rel (%p298) target = $region44
      $region43: #{tpu_custom_call.1} parent=5 // pred_region
        // Predicated region
        $region45: #{tpu_custom_call.1} parent=43 // pred_check
          %p301 = pneg %p42
        $region46: #{tpu_custom_call.1} parent=43 // pred_check_branch
          %303 = sbr.rel (%p301) target = $region48
        $region47: #{tpu_custom_call.1} parent=43 // pred_region
          %s304 = sand.u32 %s32, 1
          %s305 = scalar_lea.sflag [#allocation3], %s304
          %s306 = sand.u32 %s32, 1
          %s307 = smul.addr %s306, 8
          %s308 = scalar_lea.vmem [#allocation2], %s307
          %s310 = ssub.s32 128, 128
          %311 = vsyncadd %s305, %s310
          %s312 = smul.addr %s22, 128
          %s313 = scalar_lea.hbm %s0, %s312
          %s315 = sshll.u32 %s308, 4
          %s316 = int_to_ptr.vmem [resolvable:$true] %s315
          %318 = dma.hbm_to_vmem [thread:$0]  %s313, 128, %s316, %s305
        $region48: #{tpu_custom_call.1} parent=43 // pred_fallthru
          _
      $region44: #{tpu_custom_call.1} parent=5 // pred_fallthru
        _
      %p319 = scmp.le.s32.totalorder 1, %s22
      %p320 = scmp.lt.s32.totalorder %s22, 3
      %p321 = pnand %p319, %p320
      %p322 = pneg %p321
      // Predicated region
      $region49: #{tpu_custom_call.1} parent=5 // pred_check
        _
      $region50: #{tpu_custom_call.1} parent=5 // pred_check_branch
        %324 = sbr.rel (%p321) target = $region52
      $region51: #{tpu_custom_call.1} parent=5 // pred_region
        %s325 = ssub.s32 %s22, 1
        %s326 = sand.u32 %s35, 1
        %s327 = scalar_lea.sflag [#allocation3], %s326
        %s328 = sand.u32 %s35, 1
        %s329 = smul.addr %s328, 8
        %s330 = scalar_lea.vmem [#allocation2], %s329
        // Predicated region
        $region53: #{tpu_custom_call.1} parent=51 // pred_check
          %p331 = pneg %p48
        $region54: #{tpu_custom_call.1} parent=51 // pred_check_branch
          %333 = sbr.rel (%p331) target = $region56
        $region55: #{tpu_custom_call.1} parent=51 // pred_region
          %334 = dma.done %s327, 128
        $region56: #{tpu_custom_call.1} parent=51 // pred_fallthru
          _
        // Predicated region
        $region57: #{tpu_custom_call.1} parent=51 // pred_check
          %p335 = pneg %p111
        $region58: #{tpu_custom_call.1} parent=51 // pred_check_branch
          %337 = sbr.rel (%p335) target = $region60
        $region59: #{tpu_custom_call.1} parent=51 // pred_region
          %338 = dma.done [#allocation6], 512
        $region60: #{tpu_custom_call.1} parent=51 // pred_fallthru
          _
        // Predicated region
        $region61: #{tpu_custom_call.1} parent=51 // pred_check
          %p339 = pneg %p132
        $region62: #{tpu_custom_call.1} parent=51 // pred_check_branch
          %341 = sbr.rel (%p339) target = $region64
        $region63: #{tpu_custom_call.1} parent=51 // pred_region
          %342 = dma.done [#allocation6], 512
        $region64: #{tpu_custom_call.1} parent=51 // pred_fallthru
          _
        // Predicated region
        $region65: #{tpu_custom_call.1} parent=51 // pred_check
          %p343 = pneg %p153
        $region66: #{tpu_custom_call.1} parent=51 // pred_check_branch
          %345 = sbr.rel (%p343) target = $region68
        $region67: #{tpu_custom_call.1} parent=51 // pred_region
          %346 = dma.done [#allocation9], 512
        $region68: #{tpu_custom_call.1} parent=51 // pred_fallthru
          _
        // Predicated region
        $region69: #{tpu_custom_call.1} parent=51 // pred_check
          %p347 = pneg %p174
        $region70: #{tpu_custom_call.1} parent=51 // pred_check_branch
          %349 = sbr.rel (%p347) target = $region72
        $region71: #{tpu_custom_call.1} parent=51 // pred_region
          %350 = dma.done [#allocation9], 512
        $region72: #{tpu_custom_call.1} parent=51 // pred_fallthru
          _
        %s351 = sand.u32 %s35, 1
        %s352 = scalar_lea.sflag [#allocation3], %s351
        %s353 = sand.u32 %s35, 1
        %s354 = smul.addr %s353, 8
        %s355 = scalar_lea.vmem [#allocation2], %s354
        %p356 = pneg %p48
        %p357 = pneg %p45
        %p358 = pneg %p69
        %p359 = pneg %p66
        %p360 = pneg %p90
        %p361 = pneg %p87
        %p362 = pneg %p111
        %p363 = pneg %p108
        %p364 = pneg %p132
        %p365 = pneg %p129
        %p366 = pneg %p153
        %p367 = pneg %p150
        %p368 = pneg %p174
        %p369 = pneg %p171
        %p370 = pneg %p195
        %p371 = pneg %p192
        %p372 = pneg %p221
        %p373 = pneg %p218
        %s374 = sand.u32 %s208, 1
        %s375 = scalar_lea.sflag [#allocation4], %s374
        %s376 = sand.u32 %s208, 1
        %s377 = smul.addr %s376, 8
        %s378 = scalar_lea.vmem [#allocation11], %s377
        %v379 = vld [vmem:[%s330] sm:$0xff]
        %vm380 = vcmask 261120
        %v381 = vsel %vm380, %v379, 0.0
        %382 = vadd.xlane.f32.xlu0 %v381
        %v383 = vpop.xlane.xlu0 %382
        %v384 = vrcp.pop 32.0
        %v385 = vmul.f32 %v383, %v384
        %v386 = vsub.f32 %v379, %v385
        %v387 = vmul.f32 %v386, %v386
        %v388 = vsel %vm380, %v387, 0.0
        %389 = vadd.xlane.f32.xlu0 %v388
        %v390 = vpop.xlane.xlu0 %389
        %v391 = vrcp.pop 31.0
        %v392 = vmul.f32 %v390, %v391
        %v393 = vadd.f32 %v392, 1e-05
        %v394 = vrsqrt.pop %v393
        %v395 = vld [vmem:[%s1] sm:$0x1]
        %v396 = vmul.f32 %v386, %v394
        %v398 = vlaneseq
        %v399 = vshrl.u32 %v398, 7
        %v400 = vsub.s32 0, %v399
        %v401 = vrot.slane %v395, %v400
        %v403 = vmul.f32 %v401, %v396
        %v404 = vld [vmem:[%s2] sm:$0x1]
        %v406 = vlaneseq
        %v407 = vshrl.u32 %v406, 7
        %v408 = vsub.s32 0, %v407
        %v409 = vrot.slane %v404, %v408
        %v411 = vadd.f32 %v403, %v409
        %v412 = vld [vmem:[#allocation5] sm:$0xff]
        %v413 = vld [vmem:[#allocation5 + $0x8] sm:$0xff]
        %v414 = vld [vmem:[#allocation5 + $0x10] sm:$0xff]
        %v415 = vld [vmem:[#allocation5 + $0x18] sm:$0xff]
        %v417 = vsel %vm380, %v411, 0
        %419 = vmatprep.subr.mxu0 0.0
        %420 = vmatpush1.msra.mxu0 0.0
        %421 = vmatprep.subr.mxu0 0.0
        %422 = vmatpush1.msra.mxu0 0.0
        %423 = vmatprep.subr.mxu0 0.0
        %424 = vmatpush1.msra.mxu0 0.0
        %425 = vmatprep.subr.mxu0 0.0
        %426 = vmatpush1.msra.mxu0 0.0
        %427 = vmatprep.subr.mxu0 0.0
        %428 = vmatpush1.msra.mxu0 0.0
        %429 = vmatprep.subr.mxu0 0.0
        %430 = vmatpush1.msra.mxu0 0.0
        %431 = vmatprep.subr.mxu0 0.0
        %432 = vmatpush1.msra.mxu0 0.0
        %433 = vmatprep.subr.mxu0 0.0
        %434 = vmatpush1.msra.mxu0 0.0
        %435 = vmatprep.subr.mxu0 0.0
        %436 = vmatpush1.msra.mxu0 0.0
        %437 = vmatprep.subr.mxu0 0.0
        %438 = vmatpush1.msra.mxu0 0.0
        %439 = vmatprep.subr.mxu0 0.0
        %440 = vmatpush1.msra.mxu0 0.0
        %441 = vmatprep.subr.mxu0 0.0
        %442 = vmatpush1.msra.mxu0 0.0
        %443 = vmatprep.subr.mxu0 0.0
        %444 = vmatpush1.msra.mxu0 %v415
        %445 = vmatprep.subr.mxu0 0.0
        %446 = vmatpush1.msra.mxu0 %v414
        %447 = vmatprep.subr.mxu0 0.0
        %448 = vmatpush1.msra.mxu0 %v413
        %449 = vmatprep.subr.mxu0 0.0
        %450 = vmatpush1.msra.mxu0 %v412
        %451 = vmatprep.subr.mxu0 0.0
        %452 = vmatpush2.msra.mxu0 0.0
        %453 = vmatprep.subr.mxu0 0.0
        %454 = vmatpush2.msra.mxu0 0.0
        %455 = vmatprep.subr.mxu0 0.0
        %456 = vmatpush2.msra.mxu0 0.0
        %457 = vmatprep.subr.mxu0 0.0
        %458 = vmatpush2.msra.mxu0 0.0
        %459 = vmatprep.subr.mxu0 0.0
        %460 = vmatpush2.msra.mxu0 0.0
        %461 = vmatprep.subr.mxu0 0.0
        %462 = vmatpush2.msra.mxu0 0.0
        %463 = vmatprep.subr.mxu0 0.0
        %464 = vmatpush2.msra.mxu0 0.0
        %465 = vmatprep.subr.mxu0 0.0
        %466 = vmatpush2.msra.mxu0 0.0
        %467 = vmatprep.subr.mxu0 0.0
        %468 = vmatpush2.msra.mxu0 0.0
        %469 = vmatprep.subr.mxu0 0.0
        %470 = vmatpush2.msra.mxu0 0.0
        %471 = vmatprep.subr.mxu0 0.0
        %472 = vmatpush2.msra.mxu0 0.0
        %473 = vmatprep.subr.mxu0 0.0
        %474 = vmatpush2.msra.mxu0 0.0
        %475 = vmatprep.subr.mxu0 0.0
        %476 = vmatpush2.msra.mxu0 0.0
        %477 = vmatprep.subr.mxu0 0.0
        %478 = vmatpush2.msra.mxu0 0.0
        %479 = vmatprep.subr.mxu0 0.0
        %480 = vmatpush2.msra.mxu0 0.0
        %481 = vmatprep.subr.mxu0 0.0
        %482 = vmatpush2.msra.mxu0 0.0
        %483 = vmatprep.mubr.f32.mxu0 0.0
        %484 = vmatmul.mubr.f32.gmra.mxu0 %v417
        %v485 = vpop.f32.mrf.mxu0
        %v486 = vadd.f32 0.0, %v485
        %v487 = vpop.f32.mrf.mxu0
        %488 = vdwg.mxu0
        %v489 = vld [vmem:[#allocation7] sm:$0xff]
        %v490 = vld [vmem:[#allocation7 + $0x8] sm:$0xff]
        %v491 = vld [vmem:[#allocation7 + $0x10] sm:$0xff]
        %v492 = vld [vmem:[#allocation7 + $0x18] sm:$0xff]
        %493 = vmatprep.subr.mxu0 0.0
        %494 = vmatpush1.msra.mxu0 0.0
        %495 = vmatprep.subr.mxu0 0.0
        %496 = vmatpush1.msra.mxu0 0.0
        %497 = vmatprep.subr.mxu0 0.0
        %498 = vmatpush1.msra.mxu0 0.0
        %499 = vmatprep.subr.mxu0 0.0
        %500 = vmatpush1.msra.mxu0 0.0
        %501 = vmatprep.subr.mxu0 0.0
        %502 = vmatpush1.msra.mxu0 0.0
        %503 = vmatprep.subr.mxu0 0.0
        %504 = vmatpush1.msra.mxu0 0.0
        %505 = vmatprep.subr.mxu0 0.0
        %506 = vmatpush1.msra.mxu0 0.0
        %507 = vmatprep.subr.mxu0 0.0
        %508 = vmatpush1.msra.mxu0 0.0
        %509 = vmatprep.subr.mxu0 0.0
        %510 = vmatpush1.msra.mxu0 0.0
        %511 = vmatprep.subr.mxu0 0.0
        %512 = vmatpush1.msra.mxu0 0.0
        %513 = vmatprep.subr.mxu0 0.0
        %514 = vmatpush1.msra.mxu0 0.0
        %515 = vmatprep.subr.mxu0 0.0
        %516 = vmatpush1.msra.mxu0 0.0
        %517 = vmatprep.subr.mxu0 0.0
        %518 = vmatpush1.msra.mxu0 %v492
        %519 = vmatprep.subr.mxu0 0.0
        %520 = vmatpush1.msra.mxu0 %v491
        %521 = vmatprep.subr.mxu0 0.0
        %522 = vmatpush1.msra.mxu0 %v490
        %523 = vmatprep.subr.mxu0 0.0
        %524 = vmatpush1.msra.mxu0 %v489
        %525 = vmatprep.subr.mxu0 0.0
        %526 = vmatpush2.msra.mxu0 0.0
        %527 = vmatprep.subr.mxu0 0.0
        %528 = vmatpush2.msra.mxu0 0.0
        %529 = vmatprep.subr.mxu0 0.0
        %530 = vmatpush2.msra.mxu0 0.0
        %531 = vmatprep.subr.mxu0 0.0
        %532 = vmatpush2.msra.mxu0 0.0
        %533 = vmatprep.subr.mxu0 0.0
        %534 = vmatpush2.msra.mxu0 0.0
        %535 = vmatprep.subr.mxu0 0.0
        %536 = vmatpush2.msra.mxu0 0.0
        %537 = vmatprep.subr.mxu0 0.0
        %538 = vmatpush2.msra.mxu0 0.0
        %539 = vmatprep.subr.mxu0 0.0
        %540 = vmatpush2.msra.mxu0 0.0
        %541 = vmatprep.subr.mxu0 0.0
        %542 = vmatpush2.msra.mxu0 0.0
        %543 = vmatprep.subr.mxu0 0.0
        %544 = vmatpush2.msra.mxu0 0.0
        %545 = vmatprep.subr.mxu0 0.0
        %546 = vmatpush2.msra.mxu0 0.0
        %547 = vmatprep.subr.mxu0 0.0
        %548 = vmatpush2.msra.mxu0 0.0
        %549 = vmatprep.subr.mxu0 0.0
        %550 = vmatpush2.msra.mxu0 0.0
        %551 = vmatprep.subr.mxu0 0.0
        %552 = vmatpush2.msra.mxu0 0.0
        %553 = vmatprep.subr.mxu0 0.0
        %554 = vmatpush2.msra.mxu0 0.0
        %555 = vmatprep.subr.mxu0 0.0
        %556 = vmatpush2.msra.mxu0 0.0
        %557 = vmatprep.mubr.f32.mxu0 0.0
        %558 = vmatmul.mubr.f32.gmra.mxu0 %v417
        %v559 = vpop.f32.mrf.mxu0
        %v560 = vadd.f32 0.0, %v559
        %v561 = vpop.f32.mrf.mxu0
        %562 = vdwg.mxu0
        %v563 = vld [vmem:[#allocation8] sm:$0xff]
        %v564 = vld [vmem:[#allocation8 + $0x8] sm:$0xff]
        %v565 = vld [vmem:[#allocation8 + $0x10] sm:$0xff]
        %v566 = vld [vmem:[#allocation8 + $0x18] sm:$0xff]
        %567 = vmatprep.subr.mxu0 0.0
        %568 = vmatpush1.msra.mxu0 0.0
        %569 = vmatprep.subr.mxu0 0.0
        %570 = vmatpush1.msra.mxu0 0.0
        %571 = vmatprep.subr.mxu0 0.0
        %572 = vmatpush1.msra.mxu0 0.0
        %573 = vmatprep.subr.mxu0 0.0
        %574 = vmatpush1.msra.mxu0 0.0
        %575 = vmatprep.subr.mxu0 0.0
        %576 = vmatpush1.msra.mxu0 0.0
        %577 = vmatprep.subr.mxu0 0.0
        %578 = vmatpush1.msra.mxu0 0.0
        %579 = vmatprep.subr.mxu0 0.0
        %580 = vmatpush1.msra.mxu0 0.0
        %581 = vmatprep.subr.mxu0 0.0
        %582 = vmatpush1.msra.mxu0 0.0
        %583 = vmatprep.subr.mxu0 0.0
        %584 = vmatpush1.msra.mxu0 0.0
        %585 = vmatprep.subr.mxu0 0.0
        %586 = vmatpush1.msra.mxu0 0.0
        %587 = vmatprep.subr.mxu0 0.0
        %588 = vmatpush1.msra.mxu0 0.0
        %589 = vmatprep.subr.mxu0 0.0
        %590 = vmatpush1.msra.mxu0 0.0
        %591 = vmatprep.subr.mxu0 0.0
        %592 = vmatpush1.msra.mxu0 %v566
        %593 = vmatprep.subr.mxu0 0.0
        %594 = vmatpush1.msra.mxu0 %v565
        %595 = vmatprep.subr.mxu0 0.0
        %596 = vmatpush1.msra.mxu0 %v564
        %597 = vmatprep.subr.mxu0 0.0
        %598 = vmatpush1.msra.mxu0 %v563
        %599 = vmatprep.subr.mxu0 0.0
        %600 = vmatpush2.msra.mxu0 0.0
        %601 = vmatprep.subr.mxu0 0.0
        %602 = vmatpush2.msra.mxu0 0.0
        %603 = vmatprep.subr.mxu0 0.0
        %604 = vmatpush2.msra.mxu0 0.0
        %605 = vmatprep.subr.mxu0 0.0
        %606 = vmatpush2.msra.mxu0 0.0
        %607 = vmatprep.subr.mxu0 0.0
        %608 = vmatpush2.msra.mxu0 0.0
        %609 = vmatprep.subr.mxu0 0.0
        %610 = vmatpush2.msra.mxu0 0.0
        %611 = vmatprep.subr.mxu0 0.0
        %612 = vmatpush2.msra.mxu0 0.0
        %613 = vmatprep.subr.mxu0 0.0
        %614 = vmatpush2.msra.mxu0 0.0
        %615 = vmatprep.subr.mxu0 0.0
        %616 = vmatpush2.msra.mxu0 0.0
        %617 = vmatprep.subr.mxu0 0.0
        %618 = vmatpush2.msra.mxu0 0.0
        %619 = vmatprep.subr.mxu0 0.0
        %620 = vmatpush2.msra.mxu0 0.0
        %621 = vmatprep.subr.mxu0 0.0
        %622 = vmatpush2.msra.mxu0 0.0
        %623 = vmatprep.subr.mxu0 0.0
        %624 = vmatpush2.msra.mxu0 0.0
        %625 = vmatprep.subr.mxu0 0.0
        %626 = vmatpush2.msra.mxu0 0.0
        %627 = vmatprep.subr.mxu0 0.0
        %628 = vmatpush2.msra.mxu0 0.0
        %629 = vmatprep.subr.mxu0 0.0
        %630 = vmatpush2.msra.mxu0 0.0
        %631 = vmatprep.mubr.f32.mxu0 0.0
        %632 = vmatmul.mubr.f32.gmra.mxu0 %v417
        %v633 = vpop.f32.mrf.mxu0
        %v634 = vadd.f32 0.0, %v633
        %v635 = vpop.f32.mrf.mxu0
        %636 = vdwg.mxu0
        %v637 = vlaneseq
        %v638 = vshrl.u32 %v637, 7
        %v639 = vlaneseq
        %v640 = vand.u32 %v639, 127
        %vm641 = vcmp.le.s32.totalorder %v640, %v638
        %vm642 = vcmask 130048
        %v644 = vsel %vm642, %v486, 0
        %v647 = vsel %vm642, %v560, 0
        %649 = vmatprep.subr.mxu0 0.0
        %650 = vmatpush1.xpose.msra.mxu0 0.0
        %651 = vmatprep.subr.mxu0 0.0
        %652 = vmatpush1.xpose.msra.mxu0 0.0
        %653 = vmatprep.subr.mxu0 0.0
        %654 = vmatpush1.xpose.msra.mxu0 0.0
        %655 = vmatprep.subr.mxu0 0.0
        %656 = vmatpush1.xpose.msra.mxu0 0.0
        %657 = vmatprep.subr.mxu0 0.0
        %658 = vmatpush1.xpose.msra.mxu0 0.0
        %659 = vmatprep.subr.mxu0 0.0
        %660 = vmatpush1.xpose.msra.mxu0 0.0
        %661 = vmatprep.subr.mxu0 0.0
        %662 = vmatpush1.xpose.msra.mxu0 0.0
        %663 = vmatprep.subr.mxu0 0.0
        %664 = vmatpush1.xpose.msra.mxu0 0.0
        %665 = vmatprep.subr.mxu0 0.0
        %666 = vmatpush1.xpose.msra.mxu0 0.0
        %667 = vmatprep.subr.mxu0 0.0
        %668 = vmatpush1.xpose.msra.mxu0 0.0
        %669 = vmatprep.subr.mxu0 0.0
        %670 = vmatpush1.xpose.msra.mxu0 0.0
        %671 = vmatprep.subr.mxu0 0.0
        %672 = vmatpush1.xpose.msra.mxu0 0.0
        %673 = vmatprep.subr.mxu0 0.0
        %674 = vmatpush1.xpose.msra.mxu0 0.0
        %675 = vmatprep.subr.mxu0 0.0
        %676 = vmatpush1.xpose.msra.mxu0 0.0
        %677 = vmatprep.subr.mxu0 0.0
        %678 = vmatpush1.xpose.msra.mxu0 0.0
        %679 = vmatprep.subr.mxu0 0.0
        %680 = vmatpush1.xpose.msra.mxu0 %v647
        %681 = vmatprep.subr.mxu0 0.0
        %682 = vmatpush2.xpose.msra.mxu0 0.0
        %683 = vmatprep.subr.mxu0 0.0
        %684 = vmatpush2.xpose.msra.mxu0 0.0
        %685 = vmatprep.subr.mxu0 0.0
        %686 = vmatpush2.xpose.msra.mxu0 0.0
        %687 = vmatprep.subr.mxu0 0.0
        %688 = vmatpush2.xpose.msra.mxu0 0.0
        %689 = vmatprep.subr.mxu0 0.0
        %690 = vmatpush2.xpose.msra.mxu0 0.0
        %691 = vmatprep.subr.mxu0 0.0
        %692 = vmatpush2.xpose.msra.mxu0 0.0
        %693 = vmatprep.subr.mxu0 0.0
        %694 = vmatpush2.xpose.msra.mxu0 0.0
        %695 = vmatprep.subr.mxu0 0.0
        %696 = vmatpush2.xpose.msra.mxu0 0.0
        %697 = vmatprep.subr.mxu0 0.0
        %698 = vmatpush2.xpose.msra.mxu0 0.0
        %699 = vmatprep.subr.mxu0 0.0
        %700 = vmatpush2.xpose.msra.mxu0 0.0
        %701 = vmatprep.subr.mxu0 0.0
        %702 = vmatpush2.xpose.msra.mxu0 0.0
        %703 = vmatprep.subr.mxu0 0.0
        %704 = vmatpush2.xpose.msra.mxu0 0.0
        %705 = vmatprep.subr.mxu0 0.0
        %706 = vmatpush2.xpose.msra.mxu0 0.0
        %707 = vmatprep.subr.mxu0 0.0
        %708 = vmatpush2.xpose.msra.mxu0 0.0
        %709 = vmatprep.subr.mxu0 0.0
        %710 = vmatpush2.xpose.msra.mxu0 0.0
        %711 = vmatprep.subr.mxu0 0.0
        %712 = vmatpush2.xpose.msra.mxu0 0.0
        %713 = vmatprep.mubr.f32.mxu0 0.0
        %714 = vmatmul.mubr.f32.gmra.mxu0 %v644
        %v715 = vpop.f32.mrf.mxu0
        %v716 = vadd.f32 0.0, %v715
        %v717 = vpop.f32.mrf.mxu0
        %718 = vdwg.mxu0
        %v719 = vmul.f32 %v716, 0.25
        %v720 = vsel %vm641, %v719, -1e+30
        %vm721 = vcmask 64512
        %v722 = vsel %vm721, %v720, -inf
        %723 = vmax.xlane.f32.xlu0 %v722
        %v724 = vpop.xlane.xlu0 %723
        %v725 = vsub.f32 %v720, %v724
        %v726 = vmul.f32 %v725, 1.442695
        %v727 = vpow.pop %v726
        %v728 = vsel %vm721, %v727, 0.0
        %729 = vadd.xlane.f32.xlu0 %v728
        %v730 = vpop.xlane.xlu0 %729
        %v731 = vrcp.pop %v730
        %v732 = vmul.f32 %v727, %v731
        %v734 = vsel %vm721, %v732, 0
        %736 = vmatprep.subr.mxu0 0.0
        %737 = vmatpush1.msra.mxu0 0.0
        %738 = vmatprep.subr.mxu0 0.0
        %739 = vmatpush1.msra.mxu0 0.0
        %740 = vmatprep.subr.mxu0 0.0
        %741 = vmatpush1.msra.mxu0 0.0
        %742 = vmatprep.subr.mxu0 0.0
        %743 = vmatpush1.msra.mxu0 0.0
        %744 = vmatprep.subr.mxu0 0.0
        %745 = vmatpush1.msra.mxu0 0.0
        %746 = vmatprep.subr.mxu0 0.0
        %747 = vmatpush1.msra.mxu0 0.0
        %748 = vmatprep.subr.mxu0 0.0
        %749 = vmatpush1.msra.mxu0 0.0
        %750 = vmatprep.subr.mxu0 0.0
        %751 = vmatpush1.msra.mxu0 0.0
        %752 = vmatprep.subr.mxu0 0.0
        %753 = vmatpush1.msra.mxu0 0.0
        %754 = vmatprep.subr.mxu0 0.0
        %755 = vmatpush1.msra.mxu0 0.0
        %756 = vmatprep.subr.mxu0 0.0
        %757 = vmatpush1.msra.mxu0 0.0
        %758 = vmatprep.subr.mxu0 0.0
        %759 = vmatpush1.msra.mxu0 0.0
        %760 = vmatprep.subr.mxu0 0.0
        %761 = vmatpush1.msra.mxu0 0.0
        %762 = vmatprep.subr.mxu0 0.0
        %763 = vmatpush1.msra.mxu0 0.0
        %764 = vmatprep.subr.mxu0 0.0
        %765 = vmatpush1.msra.mxu0 0.0
        %766 = vmatprep.subr.mxu0 0.0
        %767 = vmatpush1.msra.mxu0 %v634
        %768 = vmatprep.subr.mxu0 0.0
        %769 = vmatpush2.msra.mxu0 0.0
        %770 = vmatprep.subr.mxu0 0.0
        %771 = vmatpush2.msra.mxu0 0.0
        %772 = vmatprep.subr.mxu0 0.0
        %773 = vmatpush2.msra.mxu0 0.0
        %774 = vmatprep.subr.mxu0 0.0
        %775 = vmatpush2.msra.mxu0 0.0
        %776 = vmatprep.subr.mxu0 0.0
        %777 = vmatpush2.msra.mxu0 0.0
        %778 = vmatprep.subr.mxu0 0.0
        %779 = vmatpush2.msra.mxu0 0.0
        %780 = vmatprep.subr.mxu0 0.0
        %781 = vmatpush2.msra.mxu0 0.0
        %782 = vmatprep.subr.mxu0 0.0
        %783 = vmatpush2.msra.mxu0 0.0
        %784 = vmatprep.subr.mxu0 0.0
        %785 = vmatpush2.msra.mxu0 0.0
        %786 = vmatprep.subr.mxu0 0.0
        %787 = vmatpush2.msra.mxu0 0.0
        %788 = vmatprep.subr.mxu0 0.0
        %789 = vmatpush2.msra.mxu0 0.0
        %790 = vmatprep.subr.mxu0 0.0
        %791 = vmatpush2.msra.mxu0 0.0
        %792 = vmatprep.subr.mxu0 0.0
        %793 = vmatpush2.msra.mxu0 0.0
        %794 = vmatprep.subr.mxu0 0.0
        %795 = vmatpush2.msra.mxu0 0.0
        %796 = vmatprep.subr.mxu0 0.0
        %797 = vmatpush2.msra.mxu0 0.0
        %798 = vmatprep.subr.mxu0 0.0
        %799 = vmatpush2.msra.mxu0 0.0
        %800 = vmatprep.mubr.f32.mxu0 0.0
        %801 = vmatmul.mubr.f32.gmra.mxu0 %v734
        %v802 = vpop.f32.mrf.mxu0
        %v803 = vadd.f32 0.0, %v802
        %v804 = vpop.f32.mrf.mxu0
        %805 = vdwg.mxu0
        %806 = vrot.lane.b32.xlu0 %v486, 112
        %v807 = vpop.permute.xlu0 %806
        %808 = vrot.lane.b32.xlu0 %v560, 112
        %v809 = vpop.permute.xlu0 %808
        %v810 = vsel %vm642, %v807, 0
        %v812 = vsel %vm642, %v809, 0
        %814 = vmatprep.subr.mxu0 0.0
        %815 = vmatpush1.xpose.msra.mxu0 0.0
        %816 = vmatprep.subr.mxu0 0.0
        %817 = vmatpush1.xpose.msra.mxu0 0.0
        %818 = vmatprep.subr.mxu0 0.0
        %819 = vmatpush1.xpose.msra.mxu0 0.0
        %820 = vmatprep.subr.mxu0 0.0
        %821 = vmatpush1.xpose.msra.mxu0 0.0
        %822 = vmatprep.subr.mxu0 0.0
        %823 = vmatpush1.xpose.msra.mxu0 0.0
        %824 = vmatprep.subr.mxu0 0.0
        %825 = vmatpush1.xpose.msra.mxu0 0.0
        %826 = vmatprep.subr.mxu0 0.0
        %827 = vmatpush1.xpose.msra.mxu0 0.0
        %828 = vmatprep.subr.mxu0 0.0
        %829 = vmatpush1.xpose.msra.mxu0 0.0
        %830 = vmatprep.subr.mxu0 0.0
        %831 = vmatpush1.xpose.msra.mxu0 0.0
        %832 = vmatprep.subr.mxu0 0.0
        %833 = vmatpush1.xpose.msra.mxu0 0.0
        %834 = vmatprep.subr.mxu0 0.0
        %835 = vmatpush1.xpose.msra.mxu0 0.0
        %836 = vmatprep.subr.mxu0 0.0
        %837 = vmatpush1.xpose.msra.mxu0 0.0
        %838 = vmatprep.subr.mxu0 0.0
        %839 = vmatpush1.xpose.msra.mxu0 0.0
        %840 = vmatprep.subr.mxu0 0.0
        %841 = vmatpush1.xpose.msra.mxu0 0.0
        %842 = vmatprep.subr.mxu0 0.0
        %843 = vmatpush1.xpose.msra.mxu0 0.0
        %844 = vmatprep.subr.mxu0 0.0
        %845 = vmatpush1.xpose.msra.mxu0 %v812
        %846 = vmatprep.subr.mxu0 0.0
        %847 = vmatpush2.xpose.msra.mxu0 0.0
        %848 = vmatprep.subr.mxu0 0.0
        %849 = vmatpush2.xpose.msra.mxu0 0.0
        %850 = vmatprep.subr.mxu0 0.0
        %851 = vmatpush2.xpose.msra.mxu0 0.0
        %852 = vmatprep.subr.mxu0 0.0
        %853 = vmatpush2.xpose.msra.mxu0 0.0
        %854 = vmatprep.subr.mxu0 0.0
        %855 = vmatpush2.xpose.msra.mxu0 0.0
        %856 = vmatprep.subr.mxu0 0.0
        %857 = vmatpush2.xpose.msra.mxu0 0.0
        %858 = vmatprep.subr.mxu0 0.0
        %859 = vmatpush2.xpose.msra.mxu0 0.0
        %860 = vmatprep.subr.mxu0 0.0
        %861 = vmatpush2.xpose.msra.mxu0 0.0
        %862 = vmatprep.subr.mxu0 0.0
        %863 = vmatpush2.xpose.msra.mxu0 0.0
        %864 = vmatprep.subr.mxu0 0.0
        %865 = vmatpush2.xpose.msra.mxu0 0.0
        %866 = vmatprep.subr.mxu0 0.0
        %867 = vmatpush2.xpose.msra.mxu0 0.0
        %868 = vmatprep.subr.mxu0 0.0
        %869 = vmatpush2.xpose.msra.mxu0 0.0
        %870 = vmatprep.subr.mxu0 0.0
        %871 = vmatpush2.xpose.msra.mxu0 0.0
        %872 = vmatprep.subr.mxu0 0.0
        %873 = vmatpush2.xpose.msra.mxu0 0.0
        %874 = vmatprep.subr.mxu0 0.0
        %875 = vmatpush2.xpose.msra.mxu0 0.0
        %876 = vmatprep.subr.mxu0 0.0
        %877 = vmatpush2.xpose.msra.mxu0 0.0
        %878 = vmatprep.mubr.f32.mxu0 0.0
        %879 = vmatmul.mubr.f32.gmra.mxu0 %v810
        %v880 = vpop.f32.mrf.mxu0
        %v881 = vadd.f32 0.0, %v880
        %v882 = vpop.f32.mrf.mxu0
        %883 = vdwg.mxu0
        %v884 = vmul.f32 %v881, 0.25
        %v885 = vsel %vm641, %v884, -1e+30
        %v886 = vsel %vm721, %v885, -inf
        %887 = vmax.xlane.f32.xlu0 %v886
        %v888 = vpop.xlane.xlu0 %887
        %v889 = vsub.f32 %v885, %v888
        %v890 = vmul.f32 %v889, 1.442695
        %v891 = vpow.pop %v890
        %v892 = vsel %vm721, %v891, 0.0
        %893 = vadd.xlane.f32.xlu0 %v892
        %v894 = vpop.xlane.xlu0 %893
        %v895 = vrcp.pop %v894
        %v896 = vmul.f32 %v891, %v895
        %898 = vrot.lane.b32.xlu0 %v634, 112
        %v899 = vpop.permute.xlu0 %898
        %v902 = vsel %vm721, %v896, 0
        %904 = vmatprep.subr.mxu0 0.0
        %905 = vmatpush1.msra.mxu0 0.0
        %906 = vmatprep.subr.mxu0 0.0
        %907 = vmatpush1.msra.mxu0 0.0
        %908 = vmatprep.subr.mxu0 0.0
        %909 = vmatpush1.msra.mxu0 0.0
        %910 = vmatprep.subr.mxu0 0.0
        %911 = vmatpush1.msra.mxu0 0.0
        %912 = vmatprep.subr.mxu0 0.0
        %913 = vmatpush1.msra.mxu0 0.0
        %914 = vmatprep.subr.mxu0 0.0
        %915 = vmatpush1.msra.mxu0 0.0
        %916 = vmatprep.subr.mxu0 0.0
        %917 = vmatpush1.msra.mxu0 0.0
        %918 = vmatprep.subr.mxu0 0.0
        %919 = vmatpush1.msra.mxu0 0.0
        %920 = vmatprep.subr.mxu0 0.0
        %921 = vmatpush1.msra.mxu0 0.0
        %922 = vmatprep.subr.mxu0 0.0
        %923 = vmatpush1.msra.mxu0 0.0
        %924 = vmatprep.subr.mxu0 0.0
        %925 = vmatpush1.msra.mxu0 0.0
        %926 = vmatprep.subr.mxu0 0.0
        %927 = vmatpush1.msra.mxu0 0.0
        %928 = vmatprep.subr.mxu0 0.0
        %929 = vmatpush1.msra.mxu0 0.0
        %930 = vmatprep.subr.mxu0 0.0
        %931 = vmatpush1.msra.mxu0 0.0
        %932 = vmatprep.subr.mxu0 0.0
        %933 = vmatpush1.msra.mxu0 0.0
        %934 = vmatprep.subr.mxu0 0.0
        %935 = vmatpush1.msra.mxu0 %v899
        %936 = vmatprep.subr.mxu0 0.0
        %937 = vmatpush2.msra.mxu0 0.0
        %938 = vmatprep.subr.mxu0 0.0
        %939 = vmatpush2.msra.mxu0 0.0
        %940 = vmatprep.subr.mxu0 0.0
        %941 = vmatpush2.msra.mxu0 0.0
        %942 = vmatprep.subr.mxu0 0.0
        %943 = vmatpush2.msra.mxu0 0.0
        %944 = vmatprep.subr.mxu0 0.0
        %945 = vmatpush2.msra.mxu0 0.0
        %946 = vmatprep.subr.mxu0 0.0
        %947 = vmatpush2.msra.mxu0 0.0
        %948 = vmatprep.subr.mxu0 0.0
        %949 = vmatpush2.msra.mxu0 0.0
        %950 = vmatprep.subr.mxu0 0.0
        %951 = vmatpush2.msra.mxu0 0.0
        %952 = vmatprep.subr.mxu0 0.0
        %953 = vmatpush2.msra.mxu0 0.0
        %954 = vmatprep.subr.mxu0 0.0
        %955 = vmatpush2.msra.mxu0 0.0
        %956 = vmatprep.subr.mxu0 0.0
        %957 = vmatpush2.msra.mxu0 0.0
        %958 = vmatprep.subr.mxu0 0.0
        %959 = vmatpush2.msra.mxu0 0.0
        %960 = vmatprep.subr.mxu0 0.0
        %961 = vmatpush2.msra.mxu0 0.0
        %962 = vmatprep.subr.mxu0 0.0
        %963 = vmatpush2.msra.mxu0 0.0
        %964 = vmatprep.subr.mxu0 0.0
        %965 = vmatpush2.msra.mxu0 0.0
        %966 = vmatprep.subr.mxu0 0.0
        %967 = vmatpush2.msra.mxu0 0.0
        %968 = vmatprep.mubr.f32.mxu0 0.0
        %969 = vmatmul.mubr.f32.gmra.mxu0 %v902
        %v970 = vpop.f32.mrf.mxu0
        %v971 = vadd.f32 0.0, %v970
        %v972 = vpop.f32.mrf.mxu0
        %973 = vdwg.mxu0
        %975 = vrot.lane.b32.xlu0 %v971, 16
        %v976 = vpop.permute.xlu0 %975
        %v978 = vsel %vm642, %v803, %v976
        %v979 = vld [vmem:[#allocation10] sm:$0xff]
        %v980 = vld [vmem:[#allocation10 + $0x8] sm:$0xff]
        %v981 = vld [vmem:[#allocation10 + $0x10] sm:$0xff]
        %v982 = vld [vmem:[#allocation10 + $0x18] sm:$0xff]
        %v983 = vld [vmem:[%s7] sm:$0x1]
        %v985 = vlaneseq
        %v986 = vshrl.u32 %v985, 7
        %v987 = vsub.s32 0, %v986
        %v988 = vrot.slane %v983, %v987
        %v991 = vsel %vm380, %v978, 0
        %993 = vmatprep.subr.mxu0 0.0
        %994 = vmatpush1.msra.mxu0 0.0
        %995 = vmatprep.subr.mxu0 0.0
        %996 = vmatpush1.msra.mxu0 0.0
        %997 = vmatprep.subr.mxu0 0.0
        %998 = vmatpush1.msra.mxu0 0.0
        %999 = vmatprep.subr.mxu0 0.0
        %1000 = vmatpush1.msra.mxu0 0.0
        %1001 = vmatprep.subr.mxu0 0.0
        %1002 = vmatpush1.msra.mxu0 0.0
        %1003 = vmatprep.subr.mxu0 0.0
        %1004 = vmatpush1.msra.mxu0 0.0
        %1005 = vmatprep.subr.mxu0 0.0
        %1006 = vmatpush1.msra.mxu0 0.0
        %1007 = vmatprep.subr.mxu0 0.0
        %1008 = vmatpush1.msra.mxu0 0.0
        %1009 = vmatprep.subr.mxu0 0.0
        %1010 = vmatpush1.msra.mxu0 0.0
        %1011 = vmatprep.subr.mxu0 0.0
        %1012 = vmatpush1.msra.mxu0 0.0
        %1013 = vmatprep.subr.mxu0 0.0
        %1014 = vmatpush1.msra.mxu0 0.0
        %1015 = vmatprep.subr.mxu0 0.0
        %1016 = vmatpush1.msra.mxu0 0.0
        %1017 = vmatprep.subr.mxu0 0.0
        %1018 = vmatpush1.msra.mxu0 %v982
        %1019 = vmatprep.subr.mxu0 0.0
        %1020 = vmatpush1.msra.mxu0 %v981
        %1021 = vmatprep.subr.mxu0 0.0
        %1022 = vmatpush1.msra.mxu0 %v980
        %1023 = vmatprep.subr.mxu0 0.0
        %1024 = vmatpush1.msra.mxu0 %v979
        %1025 = vmatprep.subr.mxu0 0.0
        %1026 = vmatpush2.msra.mxu0 0.0
        %1027 = vmatprep.subr.mxu0 0.0
        %1028 = vmatpush2.msra.mxu0 0.0
        %1029 = vmatprep.subr.mxu0 0.0
        %1030 = vmatpush2.msra.mxu0 0.0
        %1031 = vmatprep.subr.mxu0 0.0
        %1032 = vmatpush2.msra.mxu0 0.0
        %1033 = vmatprep.subr.mxu0 0.0
        %1034 = vmatpush2.msra.mxu0 0.0
        %1035 = vmatprep.subr.mxu0 0.0
        %1036 = vmatpush2.msra.mxu0 0.0
        %1037 = vmatprep.subr.mxu0 0.0
        %1038 = vmatpush2.msra.mxu0 0.0
        %1039 = vmatprep.subr.mxu0 0.0
        %1040 = vmatpush2.msra.mxu0 0.0
        %1041 = vmatprep.subr.mxu0 0.0
        %1042 = vmatpush2.msra.mxu0 0.0
        %1043 = vmatprep.subr.mxu0 0.0
        %1044 = vmatpush2.msra.mxu0 0.0
        %1045 = vmatprep.subr.mxu0 0.0
        %1046 = vmatpush2.msra.mxu0 0.0
        %1047 = vmatprep.subr.mxu0 0.0
        %1048 = vmatpush2.msra.mxu0 0.0
        %1049 = vmatprep.subr.mxu0 0.0
        %1050 = vmatpush2.msra.mxu0 0.0
        %1051 = vmatprep.subr.mxu0 0.0
        %1052 = vmatpush2.msra.mxu0 0.0
        %1053 = vmatprep.subr.mxu0 0.0
        %1054 = vmatpush2.msra.mxu0 0.0
        %1055 = vmatprep.subr.mxu0 0.0
        %1056 = vmatpush2.msra.mxu0 0.0
        %1057 = vmatprep.mubr.f32.mxu0 0.0
        %1058 = vmatmul.mubr.f32.gmra.mxu0 %v991
        %v1059 = vpop.f32.mrf.mxu0
        %v1060 = vadd.f32 %v988, %v1059
        %v1061 = vpop.f32.mrf.mxu0
        %1062 = vdwg.mxu0
        %v1063 = vadd.f32 %v1060, %v379
        %1064 = vst.msk [vmem:[%s378] sm:$0xff] %vm380, %v1063
        %s1065 = sand.u32 %s208, 1
        %s1066 = scalar_lea.sflag [#allocation4], %s1065
        %s1067 = sand.u32 %s208, 1
        %s1068 = smul.addr %s1067, 8
        %s1069 = scalar_lea.vmem [#allocation11], %s1068
        // Predicated region
        $region73: #{tpu_custom_call.1} parent=51 // pred_check
          %p1070 = pneg %p218
        $region74: #{tpu_custom_call.1} parent=51 // pred_check_branch
          %1072 = sbr.rel (%p1070) target = $region76
        $region75: #{tpu_custom_call.1} parent=51 // pred_region
          %s1074 = ssub.s32 128, 128
          %1075 = vsyncadd %s1066, %s1074
          %s1076 = smul.addr %s27, 128
          %s1077 = scalar_lea.hbm %s8, %s1076
          %s1079 = sshll.u32 %s1069, 4
          %s1080 = int_to_ptr.vmem [resolvable:$true] %s1079
          %1082 = dma.vmem_to_hbm [thread:$0]  %s1080, 128, %s1077, %s1066
        $region76: #{tpu_custom_call.1} parent=51 // pred_fallthru
          _
      $region52: #{tpu_custom_call.1} parent=5 // pred_fallthru
        _
      %p1083 = scmp.le.s32.totalorder 2, %s22
      // Predicated region
      $region77: #{tpu_custom_call.1} parent=5 // pred_check
        %p1084 = pneg %p1083
      $region78: #{tpu_custom_call.1} parent=5 // pred_check_branch
        %1086 = sbr.rel (%p1084) target = $region80
      $region79: #{tpu_custom_call.1} parent=5 // pred_region
        %s1087 = ssub.s32 %s22, 2
        // Predicated region
        $region81: #{tpu_custom_call.1} parent=79 // pred_check
          %p1088 = pneg %p224
        $region82: #{tpu_custom_call.1} parent=79 // pred_check_branch
          %1090 = sbr.rel (%p1088) target = $region84
        $region83: #{tpu_custom_call.1} parent=79 // pred_region
          %s1091 = sand.u32 %s209, 1
          %s1092 = scalar_lea.sflag [#allocation4], %s1091
          %s1093 = sand.u32 %s209, 1
          %s1094 = smul.addr %s1093, 8
          %s1095 = scalar_lea.vmem [#allocation11], %s1094
          %1096 = dma.done %s1092, 128
        $region84: #{tpu_custom_call.1} parent=79 // pred_fallthru
          _
      $region80: #{tpu_custom_call.1} parent=5 // pred_fallthru
        _
    $region6: #{tpu_custom_call.1} parent=1 // loop_footer
      %s26 = sadd.s32 1, %s22
    $region7: #{tpu_custom_call.1} parent=1 // loop_footer_branch
      %21 = sbr.rel target = $region3
    $region8: #{tpu_custom_call.1} parent=1 // loop_exit
      _
    %1097 = vsyncpa [#allocation3], 1
    %s1098 = scalar_lea.sflag [#allocation3], 1
    %1099 = vsyncpa %s1098, 1
    %1100 = vsyncpa [#allocation6], 1
    %1101 = vsyncpa [#allocation9], 1
    %1102 = vsyncpa [#allocation4], 1
    %s1103 = scalar_lea.sflag [#allocation4], 1
    %1104 = vsyncpa %s1103, 1

</llo_original>
